<compile_context>
chip_gen: v6e
topology: v6e:2x2x1
jax: 0.10.0
libtpu: 0.0.40
codegen_flags: <defaults>
</compile_context>

<pallas_src>
import functools
import math

import jax
import jax.numpy as jnp
from jax.experimental import pallas as pl
from jax.experimental.pallas import tpu as pltpu


# -----------------------------------------------------------------------------
# Small host-side helpers
# -----------------------------------------------------------------------------

def _cdiv(a, b):
    return -(-a // b)


def _vmem_budgets():
    """Return (working_budget_bytes, vmem_limit_cap_bytes), generation aware."""
    try:
        cap = int(pltpu.get_tpu_info().vmem_capacity_bytes)
    except Exception:
        cap = 64 << 20  # conservative (v7x-sized) fallback
    if cap >= (96 << 20):            # v5e / v6e: 128 MiB physical VMEM per core
        return 64 << 20, 100 << 20
    # v7x: 64 MiB physical per core -> leave headroom for Pallas internal scratch
    return 28 << 20, 40 << 20


def _choose_b_tile(n, per_batch_bytes, budget):
    """Batch rows per block: biggest whose double-buffered in+out set fits `budget`,
    keeping >= 2 grid steps (pipelining / v7x's two TensorCores) and, for small
    grids, an even number of steps so both cores get equal work."""
    max_by_vmem = max(1, int(budget) // max(1, 4 * per_batch_bytes))
    b_tile = max(1, min(n, max_by_vmem))
    if n < 2:
        return b_tile
    steps = max(2, _cdiv(n, b_tile))
    if steps <= 8 and steps % 2:
        steps += 1
    steps = min(steps, n)
    b_tile = _cdiv(n, steps)
    # Re-check evenness after rounding b_tile (only worth it for small grids).
    g = _cdiv(n, b_tile)
    if g <= 8 and g % 2 and b_tile > 1:
        for bt in range(b_tile, 0, -1):
            if _cdiv(n, bt) % 2 == 0:
                b_tile = bt
                break
    return b_tile


def _conv_band_matrix(w, channels):
    """Build M_T (C_in, C_out) s.t. (y @ M_T)[b, c_out] == Conv1d(y)[b, c_out].

    Conv1d(1, 1, k, padding=(k-1)//2, bias=False) over the channel axis:
        out[c] = sum_j w[j] * y[c + j - pad]   (zero padded)
    """
    k = w.shape[0]
    pad = (k - 1) // 2
    idx = jnp.arange(channels)
    diff = idx[None, :] - idx[:, None] + pad                 # (C_out, C_in)
    valid = (diff >= 0) & (diff < k)
    m = jnp.where(valid, w[jnp.clip(diff, 0, k - 1)], 0.0)   # (C_out, C_in)
    return m.T.astype(jnp.float32)                           # (C_in, C_out)


# -----------------------------------------------------------------------------
# Kernels
# -----------------------------------------------------------------------------

def _afgc_fused_kernel(x_ref, wband_ref, o_ref, *, inv_hw):
    # x_ref:     (B_TILE, C, HW)   batch tile, spatial flattened on the lane axis
    # wband_ref: (C, C)            banded conv matrix, (C_in, C_out) orientation
    # o_ref:     (B_TILE, C, HW)
    x = x_ref[...]
    # Global average pool: f32 accumulation without an upcast copy of the block.
    y = jnp.sum(x, axis=-1, dtype=jnp.float32) * inv_hw                  # (B, C)
    # k-tap channel conv as a tiny banded matmul (batched LHS).
    s = jnp.dot(y, wband_ref[...], preferred_element_type=jnp.float32)   # (B, C)
    scale = jax.nn.sigmoid(s).astype(o_ref.dtype)                        # (B, C)
    o_ref[...] = x * scale[:, :, None]


def _afgc_pool_kernel(x_ref, sum_ref, *, hw, hw_tile, masked):
    # Fallback phase 1: per-(batch, channel) spatial sums, accumulated over hw tiles.
    # x_ref: (1, C, HW_TILE)   sum_ref: (1, C, 1) float32 (accumulator across j)
    j = pl.program_id(1)

    @pl.when(j == 0)
    def _():
        sum_ref[...] = jnp.zeros_like(sum_ref)

    x = x_ref[...]
    if masked:
        lane = jax.lax.broadcasted_iota(jnp.int32, x.shape, 2) + j * hw_tile
        x = jnp.where(lane < hw, x, jnp.zeros_like(x))
    sum_ref[...] += jnp.sum(x, axis=-1, keepdims=True, dtype=jnp.float32)


def _afgc_scale_kernel(x_ref, s_ref, o_ref):
    # Fallback phase 2: broadcast multiply by the precomputed per-channel scale.
    # x_ref: (1, C, HW_TILE)   s_ref: (1, C, 1)   o_ref: (1, C, HW_TILE)
    o_ref[...] = (x_ref[...] * s_ref[...]).astype(o_ref.dtype)


# -----------------------------------------------------------------------------
# Wrappers
# -----------------------------------------------------------------------------

def _afgc_fused(x_flat, wband, *, inv_hw, budget, limit_cap):
    n, c, hw = x_flat.shape
    dsize = x_flat.dtype.itemsize
    per_batch_bytes = c * hw * dsize
    band_bytes = c * c * 4

    budget_x = max(0, budget - 2 * band_bytes)
    b_tile = _choose_b_tile(n, per_batch_bytes, budget_x)
    grid_n = _cdiv(n, b_tile)

    block_bytes = 4 * b_tile * per_batch_bytes + 2 * band_bytes
    vmem_limit = int(min(limit_cap, max(block_bytes + (4 << 20), 16 << 20)))

    cost = pl.CostEstimate(
        flops=int(2 * n * c * hw + 2 * n * c * c),        # reduce adds + bcast mul + conv
        transcendentals=int(n * c),
        bytes_accessed=int(2 * n * c * hw * dsize + c * c * 4),
    )

    kernel = functools.partial(_afgc_fused_kernel, inv_hw=inv_hw)
    return pl.pallas_call(
        kernel,
        out_shape=jax.ShapeDtypeStruct((n, c, hw), x_flat.dtype),
        grid_spec=pltpu.PrefetchScalarGridSpec(
            num_scalar_prefetch=0,
            grid=(grid_n,),
            in_specs=[
                pl.BlockSpec((b_tile, c, hw), lambda b: (b, 0, 0)),
                pl.BlockSpec((c, c), lambda b: (0, 0)),   # constant -> fetched once
            ],
            out_specs=pl.BlockSpec((b_tile, c, hw), lambda b: (b, 0, 0)),
        ),
        compiler_params=pltpu.CompilerParams(
            dimension_semantics=("parallel",),
            vmem_limit_bytes=vmem_limit,
        ),
        cost_estimate=cost,
    )(x_flat, wband)


def _afgc_two_phase(x_flat, conv_w, *, inv_hw, budget, limit_cap):
    """Fallback for activations whose fused per-batch block exceeds the VMEM budget."""
    n, c, hw = x_flat.shape
    dsize = x_flat.dtype.itemsize

    # Largest lane-dense (multiple-of-128) spatial tile whose double-buffered
    # in+out working set fits the budget; fall back to the full hw if it fits.
    hw_tile = max(128, (int(budget) // max(1, 4 * c * dsize)) // 128 * 128)
    if hw_tile >= hw:
        hw_tile = hw
    grid_hw = _cdiv(hw, hw_tile)
    masked = (hw % hw_tile) != 0

    block_bytes = 4 * c * hw_tile * dsize
    vmem_limit = int(min(limit_cap, max(block_bytes + (4 << 20), 16 << 20)))

    # Phase 1: spatial sums per (batch, channel).
    sums = pl.pallas_call(
        functools.partial(_afgc_pool_kernel, hw=hw, hw_tile=hw_tile, masked=masked),
        out_shape=jax.ShapeDtypeStruct((n, c, 1), jnp.float32),
        grid_spec=pltpu.PrefetchScalarGridSpec(
            num_scalar_prefetch=0,
            grid=(n, grid_hw),
            in_specs=[pl.BlockSpec((1, c, hw_tile), lambda i, j: (i, 0, j))],
            out_specs=pl.BlockSpec((1, c, 1), lambda i, j: (i, 0, 0)),
        ),
        compiler_params=pltpu.CompilerParams(
            dimension_semantics=("parallel", "arbitrary"),
            vmem_limit_bytes=vmem_limit,
        ),
        cost_estimate=pl.CostEstimate(
            flops=int(n * c * hw),
            transcendentals=0,
            bytes_accessed=int(n * c * hw * dsize + n * c * 4),
        ),
    )(x_flat)

    # Tiny (N, C) conv + sigmoid in plain JAX (negligible vs the x passes).
    y = sums[:, :, 0] * inv_hw                                    # (N, C) f32
    wband = _conv_band_matrix(conv_w, c)                          # (C, C) f32
    scale = jax.nn.sigmoid(jnp.dot(y, wband))[:, :, None]         # (N, C, 1) f32
    scale = scale.astype(x_flat.dtype)

    # Phase 2: broadcast multiply, tiled over (batch, hw).
    out = pl.pallas_call(
        _afgc_scale_kernel,
        out_shape=jax.ShapeDtypeStruct((n, c, hw), x_flat.dtype),
        grid_spec=pltpu.PrefetchScalarGridSpec(
            num_scalar_prefetch=0,
            grid=(n, grid_hw),
            in_specs=[
                pl.BlockSpec((1, c, hw_tile), lambda i, j: (i, 0, j)),
                pl.BlockSpec((1, c, 1), lambda i, j: (i, 0, 0)),
            ],
            out_specs=pl.BlockSpec((1, c, hw_tile), lambda i, j: (i, 0, j)),
        ),
        compiler_params=pltpu.CompilerParams(
            dimension_semantics=("parallel", "parallel"),
            vmem_limit_bytes=vmem_limit,
        ),
        cost_estimate=pl.CostEstimate(
            flops=int(n * c * hw),
            transcendentals=0,
            bytes_accessed=int(2 * n * c * hw * dsize + n * c * dsize),
        ),
    )(x_flat, scale)
    return out


def afgc_attention(x_nchw, conv_w, *, vmem_working_budget=None):
    """AFGCAttention forward.  x_nchw: (N, C, H, W); conv_w: (k,) Conv1d weight."""
    n, c, h, w = x_nchw.shape
    hw = h * w
    inv_hw = float(1.0 / hw)
    conv_w = conv_w.astype(jnp.float32).reshape(-1)

    budget, limit_cap = _vmem_budgets()
    if vmem_working_budget is not None:
        budget = int(vmem_working_budget)

    dsize = x_nchw.dtype.itemsize
    per_batch_bytes = c * hw * dsize
    band_bytes = c * c * 4

    # Free (contiguous) flatten: puts the spatial reduction on the lane axis.
    x_flat = x_nchw.reshape(n, c, hw)

    if 4 * per_batch_bytes + 2 * band_bytes <= budget:
        wband = _conv_band_matrix(conv_w, c)
        out = _afgc_fused(x_flat, wband, inv_hw=inv_hw, budget=budget,
                          limit_cap=limit_cap)
    else:
        out = _afgc_two_phase(x_flat, conv_w, inv_hw=inv_hw, budget=budget,
                              limit_cap=limit_cap)
    return out.reshape(n, c, h, w)


# -----------------------------------------------------------------------------
# Plain-JAX reference (mirrors the PyTorch forward)
# -----------------------------------------------------------------------------

def afgc_reference(x_nchw, conv_w):
    n, c, h, w = x_nchw.shape
    k = conv_w.shape[0]
    pad = (k - 1) // 2
    y = jnp.mean(x_nchw, axis=(2, 3))                          # (N, C)
    y_pad = jnp.pad(y, ((0, 0), (pad, pad)))
    out_c = jnp.stack(
        [sum(conv_w[j] * y_pad[:, co + j] for j in range(k)) for co in range(c)],
        axis=-1,
    )                                                           # (N, C)
    scale = jax.nn.sigmoid(out_c)
    return x_nchw * scale[:, :, None, None]


if __name__ == "__main__":
    # channel=16 -> t = int(|log2(16)+1| / 2) = 2 (even) -> k = 3
    batch, channel = 2, 16
    b_hyper, gamma = 1, 2
    t = int(abs((math.log(channel, 2) + b_hyper) / gamma))
    k = t if t % 2 else t + 1

    key = jax.random.PRNGKey(0)
    kx1, kx2, kx3, kw = jax.random.split(key, 4)
    bound = 1.0 / math.sqrt(1 * k)  # torch Conv1d default init bound (fan_in = 1*k)
    conv_w = jax.random.uniform(kw, (k,), jnp.float32, minval=-bound, maxval=bound)

    # 1) Lane-dense spatial size (H*W multiple of 128), even batch split.
    x1 = jax.random.normal(kx1, (batch, channel, 16, 16), dtype=jnp.float32)
    out1 = jax.block_until_ready(afgc_attention(x1, conv_w))
    ref1 = afgc_reference(x1, conv_w)
    assert out1.shape == x1.shape
    assert jnp.allclose(out1, ref1, atol=1e-5, rtol=1e-5), "mismatch (16x16)"

    # 2) H*W not a multiple of 128 (no wrapper pad) + ragged batch tiling
    #    (N=3 -> b_tile=2, last block has an out-of-bounds row).
    x2 = jax.random.normal(kx2, (3, channel, 14, 14), dtype=jnp.float32)
    out2 = jax.block_until_ready(afgc_attention(x2, conv_w))
    ref2 = afgc_reference(x2, conv_w)
    assert out2.shape == x2.shape
    assert jnp.allclose(out2, ref2, atol=1e-5, rtol=1e-5), "mismatch (14x14, ragged batch)"

    # 3) Forced two-phase fallback (budget too small for a fused per-batch block)
    #    with an H*W that is not a multiple of the spatial tile (masked tail).
    x3 = jax.random.normal(kx3, (1, channel, 60, 60), dtype=jnp.float32)
    out3 = jax.block_until_ready(
        afgc_attention(x3, conv_w, vmem_working_budget=256 * 1024))
    ref3 = afgc_reference(x3, conv_w)
    assert out3.shape == x3.shape
    assert jnp.allclose(out3, ref3, atol=1e-5, rtol=1e-5), "mismatch (fallback path)"

    print("KERNEL_OK")
</pallas_src>

<mosaic_0001>
module attributes {stable_mosaic.version = 11 : i64} {
  func.func @_afgc_fused_kernel(%arg0: i32, %arg1: memref<1x16x256xf32, #tpu.memory_space<vmem>>, %arg2: memref<16x16xf32, #tpu.memory_space<vmem>>, %arg3: memref<1x16x256xf32, #tpu.memory_space<vmem>>) attributes {dimension_semantics = [#tpu.dimension_semantics<parallel>], iteration_bounds = array<i64: 2>, scalar_prefetch = 0 : i64, scratch_operands = 0 : i64, tpu.core_type = #tpu.core_type<tc>, window_params = [{transform_indices = @transform_0, window_bounds = array<i64: 1, 16, 256>}, {pipeline_mode = #tpu.pipeline_mode<synchronous>, transform_indices = @transform_1, window_bounds = array<i64: 16, 16>}, {transform_indices = @transform_2, window_bounds = array<i64: 1, 16, 256>}]} {
    %c0 = arith.constant 0 : index
    %c0_0 = arith.constant 0 : index
    %c0_1 = arith.constant 0 : index
    %0 = vector.load %arg1[%c0, %c0_0, %c0_1] : memref<1x16x256xf32, #tpu.memory_space<vmem>>, vector<1x16x256xf32>
    %cst = arith.constant dense<0.000000e+00> : vector<1x16xf32>
    %1 = vector.multi_reduction <add>, %0, %cst [2] : vector<1x16x256xf32> to vector<1x16xf32>
    %cst_2 = arith.constant 3.906250e-03 : f32
    %2 = vector.broadcast %cst_2 : f32 to vector<1x16xf32>
    %3 = arith.mulf %1, %2 : vector<1x16xf32>
    %c0_3 = arith.constant 0 : index
    %c0_4 = arith.constant 0 : index
    %4 = vector.load %arg2[%c0_3, %c0_4] : memref<16x16xf32, #tpu.memory_space<vmem>>, vector<16x16xf32>
    %cst_5 = arith.constant dense<0.000000e+00> : vector<1x16xf32>
    %5 = tpu.matmul %3, %4, %cst_5 {dimension_numbers = #tpu.dot_dimension_numbers<[1], [0], [0], [1], [0, 0, 1, 1], [], []>} : vector<1x16xf32>, vector<16x16xf32>, vector<1x16xf32> -> vector<1x16xf32>
    %6 = arith.negf %5 : vector<1x16xf32>
    %7 = math.exp %6 : vector<1x16xf32>
    %cst_6 = arith.constant 1.000000e+00 : f32
    %8 = vector.broadcast %cst_6 : f32 to vector<1x16xf32>
    %9 = arith.addf %8, %7 : vector<1x16xf32>
    %10 = arith.divf %8, %9 : vector<1x16xf32>
    %11 = vector.shape_cast %10 : vector<1x16xf32> to vector<1x16x1xf32>
    %12 = vector.broadcast %11 : vector<1x16x1xf32> to vector<1x16x256xf32>
    %13 = arith.mulf %0, %12 : vector<1x16x256xf32>
    %c0_7 = arith.constant 0 : index
    %c0_8 = arith.constant 0 : index
    %c0_9 = arith.constant 0 : index
    %14 = vector.load %arg3[%c0_7, %c0_8, %c0_9] : memref<1x16x256xf32, #tpu.memory_space<vmem>>, vector<1x16x256xf32>
    tpu.vector_store %arg3[%c0_7, %c0_8, %c0_9], %13 {strides = array<i32>} : memref<1x16x256xf32, #tpu.memory_space<vmem>>, vector<1x16x256xf32>,
    return
  }
  func.func @transform_0(%arg0: i32) -> (i32, i32, i32) {
    %c0_i32 = arith.constant 0 : i32
    %c0_i32_0 = arith.constant 0 : i32
    %c0_i32_1 = arith.constant 0 : i32
    return %arg0, %c0_i32, %c0_i32_0 : i32, i32, i32
  }
  func.func @transform_1(%arg0: i32) -> (i32, i32) {
    %c0_i32 = arith.constant 0 : i32
    %c0_i32_0 = arith.constant 0 : i32
    %c0_i32_1 = arith.constant 0 : i32
    return %c0_i32, %c0_i32_0 : i32, i32
  }
  func.func @transform_2(%arg0: i32) -> (i32, i32, i32) {
    %c0_i32 = arith.constant 0 : i32
    %c0_i32_0 = arith.constant 0 : i32
    %c0_i32_1 = arith.constant 0 : i32
    return %arg0, %c0_i32, %c0_i32_0 : i32, i32, i32
  }
}

</mosaic_0001>

<llo_original>
// kernel: tpu_custom_call.1
$region0: #{tpu_custom_call.1}
  #allocation0 [shape = 'u32[]', space=smem, size = 0x4, offset = 0x4, fixed_abs, tag = 'smem constant byte address 0x4 - core index']
  #allocation1 [shape = 'u32[144,128]{1,0:T(1,128)}', space=vmem, size = 0x12000, scoped, tag = 'internal scratch']
  %s0 = inlined_call_operand.hbm [shape: f32[2,16,256], index: 0, kind: input, shape index: {}]
  %s1 = inlined_call_operand.hbm [shape: f32[16,16], index: 1, kind: input, shape index: {}]
  %s2 = inlined_call_operand.hbm [shape: f32[2,16,256], index: 2, kind: output, shape index: {}]
  %s3 = sld [smem:[#allocation0]]
  $region49: #{tpu_custom_call.1} parent=0
    _
  %s5 = ssub.s32 1, %s3
  %s6 = scalar_select 0, %s5, %s3
  $region1: #{tpu_custom_call.1} parent=0
    #allocation2 [shape = 'u8[32768]{0}', space=vmem, size = 0x8000, scoped, tag = 'input window, operand 0']
    #allocation3 [shape = 's32[2]{0}', space=sflag, size = 0x8, scoped, tag = 'scoped memory for tpu_custom_call.1']
    #allocation4 [shape = 's32[2]{0}', space=sflag, size = 0x8, scoped, tag = 'scoped memory for tpu_custom_call.1']
    #allocation5 [shape = 'u8[8192]{0}', space=vmem, size = 0x2000, scoped, tag = 'input window, operand 1, single buffered']
    #allocation6 [shape = 's32[1]{0}', space=sflag, size = 0x4, scoped, tag = 'scoped memory for tpu_custom_call.1']
    #allocation7 [shape = 'u8[32768]{0}', space=vmem, size = 0x8000, scoped, tag = 'output window, operand 0']
    %7 = vsyncpa [#allocation3], 0
    %s8 = scalar_lea.sflag [#allocation3], 1
    %9 = vsyncpa %s8, 0
    %10 = vsyncpa [#allocation6], 0
    %11 = vsyncpa [#allocation4], 0
    %s12 = scalar_lea.sflag [#allocation4], 1
    %13 = vsyncpa %s12, 0
    loop: start=0, step=1, limit=4
    $region2: #{tpu_custom_call.1} parent=1 // loop_pre_header
      _
    $region3: #{tpu_custom_call.1} parent=1 // loop_header
      %s15 = sphi 0, %s19
      %p16 = scmp.ge.s32.totalorder %s15, 4
      %s25 = sphi 0, %s27
      %s28 = sphi 0, %s25
      %s29 = sphi 0, %s28
      %s45 = sphi 0, %s29
      %s49 = sphi 0, %s49
      %s51 = sphi 0, %s49
      %s52 = sphi 0, %s51
      %s66 = sphi 0, %s52
      %s72 = sphi 0, %s74
      %s75 = sphi 0, %s72
      %s76 = sphi 0, %s75
      %s92 = sphi 0, %s76
    $region4: #{tpu_custom_call.1} parent=1 // loop_header_branch
      %18 = sbr.rel (%p16) target = $region8
    $region5: #{tpu_custom_call.1} parent=1 // loop_body
      %s20 = ssub.s32 %s15, 1
      %s21 = ssub.s32 %s15, 2
      %s22 = sadd.s32 %s15, 1
      %s23 = ssub.s32 %s15, %s22
      %p24 = scmp.eq.s32.totalorder %s23, 0
      %s26 = sadd.s32 %s25, 1
      %s27 = scalar_select %p24, %s25, %s26
      %p30 = pneg %p24
      %p31 = scmp.eq.s32.totalorder %s15, 1
      %p32 = por %p30, %p31
      %p33 = scmp.ne.s32.totalorder %s25, %s28
      %p34 = scmp.eq.s32.totalorder %s15, 0
      %p35 = por %p33, %p34
      %p36 = scmp.ne.s32.totalorder %s25, %s28
      %p37 = scmp.eq.s32.totalorder %s20, 1
      %p38 = por %p36, %p37
      %p39 = scmp.ne.s32.totalorder %s28, %s29
      %p40 = scmp.eq.s32.totalorder %s20, 0
      %p41 = por %p39, %p40
      %p42 = scmp.ne.s32.totalorder %s28, %s29
      %p43 = scmp.eq.s32.totalorder %s21, 1
      %p44 = por %p42, %p43
      %p46 = scmp.ne.s32.totalorder %s29, %s45
      %p47 = scmp.eq.s32.totalorder %s21, 0
      %p48 = por %p46, %p47
      %s50 = sadd.s32 %s49, 1
      %p53 = scmp.eq.s32.totalorder %s15, 1
      %p54 = scmp.ne.s32.totalorder %s49, %s51
      %p55 = scmp.eq.s32.totalorder %s15, 0
      %p56 = por %p54, %p55
      %p57 = scmp.ne.s32.totalorder %s49, %s51
      %p58 = scmp.eq.s32.totalorder %s20, 1
      %p59 = por %p57, %p58
      %p60 = scmp.ne.s32.totalorder %s51, %s52
      %p61 = scmp.eq.s32.totalorder %s20, 0
      %p62 = por %p60, %p61
      %p63 = scmp.ne.s32.totalorder %s51, %s52
      %p64 = scmp.eq.s32.totalorder %s21, 1
      %p65 = por %p63, %p64
      %p67 = scmp.ne.s32.totalorder %s52, %s66
      %p68 = scmp.eq.s32.totalorder %s21, 0
      %p69 = por %p67, %p68
      %s70 = ssub.s32 %s15, %s22
      %p71 = scmp.eq.s32.totalorder %s70, 0
      %s73 = sadd.s32 %s72, 1
      %s74 = scalar_select %p71, %s72, %s73
      %p77 = pneg %p71
      %p78 = scmp.eq.s32.totalorder %s15, 1
      %p79 = por %p77, %p78
      %p80 = scmp.ne.s32.totalorder %s72, %s75
      %p81 = scmp.eq.s32.totalorder %s15, 0
      %p82 = por %p80, %p81
      %p83 = scmp.ne.s32.totalorder %s72, %s75
      %p84 = scmp.eq.s32.totalorder %s20, 1
      %p85 = por %p83, %p84
      %p86 = scmp.ne.s32.totalorder %s75, %s76
      %p87 = scmp.eq.s32.totalorder %s20, 0
      %p88 = por %p86, %p87
      %p89 = scmp.ne.s32.totalorder %s75, %s76
      %p90 = scmp.eq.s32.totalorder %s21, 1
      %p91 = por %p89, %p90
      %p93 = scmp.ne.s32.totalorder %s76, %s92
      %p94 = scmp.eq.s32.totalorder %s21, 0
      %p95 = por %p93, %p94
      %p96 = scmp.le.s32.totalorder 1, %s15
      %p97 = scmp.lt.s32.totalorder %s15, 3
      %p98 = pnand %p96, %p97
      %p99 = pneg %p98
      // Predicated region
      $region9: #{tpu_custom_call.1} parent=5 // pred_check
        _
      $region10: #{tpu_custom_call.1} parent=5 // pred_check_branch
        %101 = sbr.rel (%p98) target = $region12
      $region11: #{tpu_custom_call.1} parent=5 // pred_region
        %s102 = ssub.s32 %s15, 1
        // Predicated region
        $region13: #{tpu_custom_call.1} parent=11 // pred_check
          %p103 = pneg %p62
        $region14: #{tpu_custom_call.1} parent=11 // pred_check_branch
          %105 = sbr.rel (%p103) target = $region16
        $region15: #{tpu_custom_call.1} parent=11 // pred_region
          %s107 = ssub.s32 256, 256
          %108 = vsyncadd [#allocation6], %s107
          %s109 = sshll.u32 [#allocation5], 4
          %s110 = int_to_ptr.vmem [resolvable:$true] %s109
          %115 = dma.hbm_to_vmem [thread:$0]  %s1, 256, %s110, [#allocation6], 128, 128, 8
        $region16: #{tpu_custom_call.1} parent=11 // pred_fallthru
          _
      $region12: #{tpu_custom_call.1} parent=5 // pred_fallthru
        _
      %p116 = scmp.lt.s32.totalorder %s15, 2
      // Predicated region
      $region17: #{tpu_custom_call.1} parent=5 // pred_check
        %p117 = pneg %p116
      $region18: #{tpu_custom_call.1} parent=5 // pred_check_branch
        %119 = sbr.rel (%p117) target = $region20
      $region19: #{tpu_custom_call.1} parent=5 // pred_region
        // Predicated region
        $region21: #{tpu_custom_call.1} parent=19 // pred_check
          %p120 = pneg %p35
        $region22: #{tpu_custom_call.1} parent=19 // pred_check_branch
          %122 = sbr.rel (%p120) target = $region24
        $region23: #{tpu_custom_call.1} parent=19 // pred_region
          %s123 = sand.u32 %s25, 1
          %s124 = scalar_lea.sflag [#allocation3], %s123
          %s125 = sand.u32 %s25, 1
          %s126 = smul.addr %s125, 32
          %s127 = scalar_lea.vmem [#allocation2], %s126
          %s129 = ssub.s32 512, 512
          %130 = vsyncadd %s124, %s129
          %s131 = smul.addr %s15, 4
          %s132 = smul.addr %s131, 128
          %s133 = scalar_lea.hbm %s0, %s132
          %s134 = sshll.u32 %s127, 4
          %s135 = int_to_ptr.vmem [resolvable:$true] %s134
          %140 = dma.hbm_to_vmem [thread:$0]  %s133, 512, %s135, %s124, 256, 256, 16
        $region24: #{tpu_custom_call.1} parent=19 // pred_fallthru
          _
      $region20: #{tpu_custom_call.1} parent=5 // pred_fallthru
        _
      %p141 = scmp.le.s32.totalorder 1, %s15
      %p142 = scmp.lt.s32.totalorder %s15, 3
      %p143 = pnand %p141, %p142
      %p144 = pneg %p143
      // Predicated region
      $region25: #{tpu_custom_call.1} parent=5 // pred_check
        _
      $region26: #{tpu_custom_call.1} parent=5 // pred_check_branch
        %146 = sbr.rel (%p143) target = $region28
      $region27: #{tpu_custom_call.1} parent=5 // pred_region
        %s147 = ssub.s32 %s15, 1
        %s148 = sand.u32 %s28, 1
        %s149 = scalar_lea.sflag [#allocation3], %s148
        %s150 = sand.u32 %s28, 1
        %s151 = smul.addr %s150, 32
        %s152 = scalar_lea.vmem [#allocation2], %s151
        // Predicated region
        $region29: #{tpu_custom_call.1} parent=27 // pred_check
          %p153 = pneg %p41
        $region30: #{tpu_custom_call.1} parent=27 // pred_check_branch
          %155 = sbr.rel (%p153) target = $region32
        $region31: #{tpu_custom_call.1} parent=27 // pred_region
          %156 = dma.done %s149, 512
        $region32: #{tpu_custom_call.1} parent=27 // pred_fallthru
          _
        // Predicated region
        $region33: #{tpu_custom_call.1} parent=27 // pred_check
          %p157 = pneg %p62
        $region34: #{tpu_custom_call.1} parent=27 // pred_check_branch
          %159 = sbr.rel (%p157) target = $region36
        $region35: #{tpu_custom_call.1} parent=27 // pred_region
          %160 = dma.done [#allocation6], 256
        $region36: #{tpu_custom_call.1} parent=27 // pred_fallthru
          _
        %s161 = sand.u32 %s28, 1
        %s162 = scalar_lea.sflag [#allocation3], %s161
        %s163 = sand.u32 %s28, 1
        %s164 = smul.addr %s163, 32
        %s165 = scalar_lea.vmem [#allocation2], %s164
        %p166 = pneg %p41
        %p167 = pneg %p38
        %p168 = pneg %p62
        %p169 = pneg %p59
        %p170 = pneg %p88
        %p171 = pneg %p85
        %s172 = sand.u32 %s75, 1
        %s173 = scalar_lea.sflag [#allocation4], %s172
        %s174 = sand.u32 %s75, 1
        %s175 = smul.addr %s174, 32
        %s176 = scalar_lea.vmem [#allocation7], %s175
        %v177 = vld [vmem:[%s152] sm:$0xff]
        %v178 = vld [vmem:[%s152 + $0x8] sm:$0xff]
        %v179 = vld [vmem:[%s152 + $0x10] sm:$0xff]
        %v180 = vld [vmem:[%s152 + $0x18] sm:$0xff]
        %v181 = vadd.f32 %v177, %v178
        %182 = vadd.xlane.f32.xlu0 %v181
        %v183 = vpop.xlane.xlu0 %182
        %v184 = vadd.f32 %v179, %v180
        %185 = vadd.xlane.f32.xlu0 %v184
        %v186 = vpop.xlane.xlu0 %185
        %v187 = vmul.f32 %v183, 0.00390625
        %v188 = vmul.f32 %v186, 0.00390625
        %v189 = vld [vmem:[#allocation5] sm:$0xff]
        %v190 = vld [vmem:[#allocation5 + $0x8] sm:$0xff]
        %v193 = vlaneseq
        %v194 = vand.u32 %v193, 127
        %v195 = vlaneseq
        %v196 = vshrl.u32 %v195, 7
        %v197 = vsub.s32 %v194, %v196
        %v198 = vrot.slane %v187, %v197
        %v199 = vadd.s32 %v194, 4294967288
        %v200 = vlaneseq
        %v201 = vshrl.u32 %v200, 7
        %v202 = vsub.s32 %v199, %v201
        %v203 = vrot.slane %v188, %v202
        %vm204 = vcmask 130112
        %v205 = vsel %vm204, %v203, %v198
        %vm206 = vcmask 130048
        %v207 = vsel %vm206, %v205, 0
        %209 = vmatprep.subr.mxu0 0.0
        %210 = vmatpush1.msra.mxu0 0.0
        %211 = vmatprep.subr.mxu0 0.0
        %212 = vmatpush1.msra.mxu0 0.0
        %213 = vmatprep.subr.mxu0 0.0
        %214 = vmatpush1.msra.mxu0 0.0
        %215 = vmatprep.subr.mxu0 0.0
        %216 = vmatpush1.msra.mxu0 0.0
        %217 = vmatprep.subr.mxu0 0.0
        %218 = vmatpush1.msra.mxu0 0.0
        %219 = vmatprep.subr.mxu0 0.0
        %220 = vmatpush1.msra.mxu0 0.0
        %221 = vmatprep.subr.mxu0 0.0
        %222 = vmatpush1.msra.mxu0 0.0
        %223 = vmatprep.subr.mxu0 0.0
        %224 = vmatpush1.msra.mxu0 0.0
        %225 = vmatprep.subr.mxu0 0.0
        %226 = vmatpush1.msra.mxu0 0.0
        %227 = vmatprep.subr.mxu0 0.0
        %228 = vmatpush1.msra.mxu0 0.0
        %229 = vmatprep.subr.mxu0 0.0
        %230 = vmatpush1.msra.mxu0 0.0
        %231 = vmatprep.subr.mxu0 0.0
        %232 = vmatpush1.msra.mxu0 0.0
        %233 = vmatprep.subr.mxu0 0.0
        %234 = vmatpush1.msra.mxu0 0.0
        %235 = vmatprep.subr.mxu0 0.0
        %236 = vmatpush1.msra.mxu0 0.0
        %237 = vmatprep.subr.mxu0 0.0
        %238 = vmatpush1.msra.mxu0 %v190
        %239 = vmatprep.subr.mxu0 0.0
        %240 = vmatpush1.msra.mxu0 %v189
        %241 = vmatprep.subr.mxu0 0.0
        %242 = vmatpush2.msra.mxu0 0.0
        %243 = vmatprep.subr.mxu0 0.0
        %244 = vmatpush2.msra.mxu0 0.0
        %245 = vmatprep.subr.mxu0 0.0
        %246 = vmatpush2.msra.mxu0 0.0
        %247 = vmatprep.subr.mxu0 0.0
        %248 = vmatpush2.msra.mxu0 0.0
        %249 = vmatprep.subr.mxu0 0.0
        %250 = vmatpush2.msra.mxu0 0.0
        %251 = vmatprep.subr.mxu0 0.0
        %252 = vmatpush2.msra.mxu0 0.0
        %253 = vmatprep.subr.mxu0 0.0
        %254 = vmatpush2.msra.mxu0 0.0
        %255 = vmatprep.subr.mxu0 0.0
        %256 = vmatpush2.msra.mxu0 0.0
        %257 = vmatprep.subr.mxu0 0.0
        %258 = vmatpush2.msra.mxu0 0.0
        %259 = vmatprep.subr.mxu0 0.0
        %260 = vmatpush2.msra.mxu0 0.0
        %261 = vmatprep.subr.mxu0 0.0
        %262 = vmatpush2.msra.mxu0 0.0
        %263 = vmatprep.subr.mxu0 0.0
        %264 = vmatpush2.msra.mxu0 0.0
        %265 = vmatprep.subr.mxu0 0.0
        %266 = vmatpush2.msra.mxu0 0.0
        %267 = vmatprep.subr.mxu0 0.0
        %268 = vmatpush2.msra.mxu0 0.0
        %269 = vmatprep.subr.mxu0 0.0
        %270 = vmatpush2.msra.mxu0 0.0
        %271 = vmatprep.subr.mxu0 0.0
        %272 = vmatpush2.msra.mxu0 0.0
        %273 = vmatprep.mubr.f32.mxu0 0.0
        %274 = vmatmul.mubr.f32.gmra.mxu0 %v207
        %v275 = vpop.f32.mrf.mxu0
        %v276 = vadd.f32 0.0, %v275
        %v277 = vpop.f32.mrf.mxu0
        %278 = vdwg.mxu0
        %v279 = vxor.u32 %v276, 2147483648
        %v280 = vmul.f32 %v279, 1.442695
        %v281 = vpow.pop %v280
        %v282 = vadd.f32 %v281, 1.0
        %v283 = vrcp.pop %v282
        %v284 = vmul.f32 1.0, %v283
        %v285 = vlaneseq
        %v286 = vshrl.u32 %v285, 7
        %v287 = vsub.s32 0, %v286
        %v288 = vrot.slane %v284, %v287
        %290 = vbcast.lane.b32.xlu0 %v288, 256
        %v291 = vpop.permute.xlu0 %290
        %s293 = sor.u32 256, 8
        %294 = vbcast.lane.b32.xlu0 %v288, %s293
        %v295 = vpop.permute.xlu0 %294
        %v296 = vmul.f32 %v177, %v291
        %v297 = vmul.f32 %v178, %v291
        %v298 = vmul.f32 %v179, %v295
        %v299 = vmul.f32 %v180, %v295
        %300 = vst [vmem:[%s176] sm:$0xff] %v296
        %301 = vst [vmem:[%s176 + $0x8] sm:$0xff] %v297
        %302 = vst [vmem:[%s176 + $0x10] sm:$0xff] %v298
        %303 = vst [vmem:[%s176 + $0x18] sm:$0xff] %v299
        %s304 = sand.u32 %s75, 1
        %s305 = scalar_lea.sflag [#allocation4], %s304
        %s306 = sand.u32 %s75, 1
        %s307 = smul.addr %s306, 32
        %s308 = scalar_lea.vmem [#allocation7], %s307
        // Predicated region
        $region37: #{tpu_custom_call.1} parent=27 // pred_check
          %p309 = pneg %p85
        $region38: #{tpu_custom_call.1} parent=27 // pred_check_branch
          %311 = sbr.rel (%p309) target = $region40
        $region39: #{tpu_custom_call.1} parent=27 // pred_region
          %s313 = ssub.s32 512, 512
          %314 = vsyncadd %s305, %s313
          %s315 = smul.addr %s20, 4
          %s316 = smul.addr %s315, 128
          %s317 = scalar_lea.hbm %s2, %s316
          %s318 = sshll.u32 %s308, 4
          %s319 = int_to_ptr.vmem [resolvable:$true] %s318
          %324 = dma.vmem_to_hbm [thread:$0]  %s319, 512, %s317, %s305, 256, 256, 16
        $region40: #{tpu_custom_call.1} parent=27 // pred_fallthru
          _
      $region28: #{tpu_custom_call.1} parent=5 // pred_fallthru
        _
      %p325 = scmp.le.s32.totalorder 2, %s15
      // Predicated region
      $region41: #{tpu_custom_call.1} parent=5 // pred_check
        %p326 = pneg %p325
      $region42: #{tpu_custom_call.1} parent=5 // pred_check_branch
        %328 = sbr.rel (%p326) target = $region44
      $region43: #{tpu_custom_call.1} parent=5 // pred_region
        %s329 = ssub.s32 %s15, 2
        // Predicated region
        $region45: #{tpu_custom_call.1} parent=43 // pred_check
          %p330 = pneg %p91
        $region46: #{tpu_custom_call.1} parent=43 // pred_check_branch
          %332 = sbr.rel (%p330) target = $region48
        $region47: #{tpu_custom_call.1} parent=43 // pred_region
          %s333 = sand.u32 %s76, 1
          %s334 = scalar_lea.sflag [#allocation4], %s333
          %s335 = sand.u32 %s76, 1
          %s336 = smul.addr %s335, 32
          %s337 = scalar_lea.vmem [#allocation7], %s336
          %338 = dma.done %s334, 512
        $region48: #{tpu_custom_call.1} parent=43 // pred_fallthru
          _
      $region44: #{tpu_custom_call.1} parent=5 // pred_fallthru
        _
    $region6: #{tpu_custom_call.1} parent=1 // loop_footer
      %s19 = sadd.s32 1, %s15
    $region7: #{tpu_custom_call.1} parent=1 // loop_footer_branch
      %14 = sbr.rel target = $region3
    $region8: #{tpu_custom_call.1} parent=1 // loop_exit
      _
    %339 = vsyncpa [#allocation3], 1
    %s340 = scalar_lea.sflag [#allocation3], 1
    %341 = vsyncpa %s340, 1
    %342 = vsyncpa [#allocation6], 1
    %343 = vsyncpa [#allocation4], 1
    %s344 = scalar_lea.sflag [#allocation4], 1
    %345 = vsyncpa %s344, 1

</llo_original>
